<compile_context>
chip_gen: v5e
topology: v5e:2x2
jax: 0.10.0
libtpu: 0.0.40
codegen_flags: <defaults>
</compile_context>

<pallas_src>
import jax
import jax.numpy as jnp
from jax.experimental import pallas as pl
from jax.experimental.pallas import tpu as pltpu


def _model_kernel(params_ref, inputs_ref, out_ref):
    # params_ref (SMEM, shape (8,)): [w1, b1, w2, b2, w3, b3, w4, b4]
    # (w2, b2 belong to the dead linear2 branch and are intentionally unused.)
    w1, b1 = params_ref[0], params_ref[1]
    w3, b3 = params_ref[4], params_ref[5]
    w4, b4 = params_ref[6], params_ref[7]

    # Fold the chained scalar affines (scalar-unit work, free here).
    cw = w3 * w3            # linear3 applied twice: weight
    cb = w3 * b3 + b3       # linear3 applied twice: bias
    s1 = 3.0 * (w4 * w3)    # 3 * linear4(linear3(.)) weight
    s0 = 3.0 * (w4 * b3 + b4)

    a = inputs_ref[0]       # input1
    b = inputs_ref[1]       # input2
    c = inputs_ref[2]       # input3

    # Live dataflow of the original graph:
    #   x2 = linear1(input1); t = x2 @ input2
    x2 = w1 * a + b1
    t = jnp.dot(x2, b, preferred_element_type=jnp.float32)
    #   v = linear3(linear3(t))
    v = cw * t + cb
    #   x4 = v @ input3
    x4 = jnp.dot(v, c, preferred_element_type=jnp.float32)
    #   return 3*linear4(linear3(v)) + 2*x4
    out_ref[...] = s1 * v + s0 + 2.0 * x4


def model_forward(params, input1, input2, input3):
    n, m = input1.shape
    stacked = jnp.stack([input1, input2, input3], axis=0)  # one DMA, not three
    return pl.pallas_call(
        _model_kernel,
        out_shape=jax.ShapeDtypeStruct((n, m), jnp.float32),
        grid=(),
        in_specs=[
            pl.BlockSpec(memory_space=pltpu.MemorySpace.SMEM),     # scalar params
            pl.BlockSpec((3, n, m), lambda: (0, 0, 0)),            # stacked inputs
        ],
        out_specs=pl.BlockSpec((n, m), lambda: (0, 0)),
    )(params, stacked)


def _reference(params, input1, input2, input3):
    # Faithful (unfused) transcription of the original forward.
    w1, b1, w2, b2, w3, b3, w4, b4 = [params[i] for i in range(8)]
    x1 = input1 @ input1
    x2 = w1 * input1 + b1
    x3 = x2 @ x1
    _ = w2 * x3 + b2              # dead in the original graph
    x1 = x2 @ input2
    x2 = w3 * x1 + b3
    x3 = w3 * x2 + b3
    x4 = x3 @ input3
    x1 = w3 * x3 + b3
    x2 = w4 * x1 + b4
    x3 = x4 + x2
    return x2 + x3 + x3


if __name__ == "__main__":
    key = jax.random.PRNGKey(0)
    k1, k2, k3, kp = jax.random.split(key, 4)

    input1 = jax.random.normal(k1, (4, 4), dtype=jnp.float32)
    input2 = jax.random.normal(k2, (4, 4), dtype=jnp.float32)
    input3 = jax.random.normal(k3, (4, 4), dtype=jnp.float32)

    # Deterministic "Linear(1,1)" params: 4 x (weight, bias) scalars,
    # uniform(-1, 1) like PyTorch's default init bound (1/sqrt(in_features)=1).
    params = jax.random.uniform(kp, (8,), dtype=jnp.float32, minval=-1.0, maxval=1.0)

    out = model_forward(params, input1, input2, input3)
    out = jax.block_until_ready(out)

    ref = _reference(params, input1, input2, input3)
    assert out.shape == (4, 4)
    assert jnp.allclose(out, ref, atol=1e-4, rtol=1e-4), (out, ref)

    print("KERNEL_OK")
</pallas_src>

<mosaic_0001>
module attributes {stable_mosaic.version = 11 : i64} {
  func.func @_model_kernel(%arg0: memref<8xf32, #tpu.memory_space<smem>>, %arg1: memref<3x4x4xf32, #tpu.memory_space<vmem>>, %arg2: memref<4x4xf32, #tpu.memory_space<vmem>>) attributes {dimension_semantics = [], scalar_prefetch = 0 : i64, scratch_operands = 0 : i64, tpu.core_type = #tpu.core_type<tc>} {
    %c0 = arith.constant 0 : index
    %0 = memref.load %arg0[%c0] : memref<8xf32, #tpu.memory_space<smem>>
    %c1 = arith.constant 1 : index
    %1 = memref.load %arg0[%c1] : memref<8xf32, #tpu.memory_space<smem>>
    %c4 = arith.constant 4 : index
    %2 = memref.load %arg0[%c4] : memref<8xf32, #tpu.memory_space<smem>>
    %c5 = arith.constant 5 : index
    %3 = memref.load %arg0[%c5] : memref<8xf32, #tpu.memory_space<smem>>
    %c6 = arith.constant 6 : index
    %4 = memref.load %arg0[%c6] : memref<8xf32, #tpu.memory_space<smem>>
    %c7 = arith.constant 7 : index
    %5 = memref.load %arg0[%c7] : memref<8xf32, #tpu.memory_space<smem>>
    %6 = arith.mulf %2, %2 : f32
    %7 = arith.mulf %2, %3 : f32
    %8 = arith.addf %7, %3 : f32
    %9 = arith.mulf %4, %2 : f32
    %cst = arith.constant 3.000000e+00 : f32
    %10 = arith.mulf %cst, %9 : f32
    %11 = arith.mulf %4, %3 : f32
    %12 = arith.addf %11, %5 : f32
    %cst_0 = arith.constant 3.000000e+00 : f32
    %13 = arith.mulf %cst_0, %12 : f32
    %c0_1 = arith.constant 0 : index
    %c0_2 = arith.constant 0 : index
    %c0_3 = arith.constant 0 : index
    %14 = vector.load %arg1[%c0_1, %c0_2, %c0_3] : memref<3x4x4xf32, #tpu.memory_space<vmem>>, vector<1x4x4xf32>
    %15 = vector.shape_cast %14 : vector<1x4x4xf32> to vector<4x4xf32>
    %c1_4 = arith.constant 1 : index
    %c0_5 = arith.constant 0 : index
    %c0_6 = arith.constant 0 : index
    %16 = vector.load %arg1[%c1_4, %c0_5, %c0_6] : memref<3x4x4xf32, #tpu.memory_space<vmem>>, vector<1x4x4xf32>
    %17 = vector.shape_cast %16 : vector<1x4x4xf32> to vector<4x4xf32>
    %c2 = arith.constant 2 : index
    %c0_7 = arith.constant 0 : index
    %c0_8 = arith.constant 0 : index
    %18 = vector.load %arg1[%c2, %c0_7, %c0_8] : memref<3x4x4xf32, #tpu.memory_space<vmem>>, vector<1x4x4xf32>
    %19 = vector.shape_cast %18 : vector<1x4x4xf32> to vector<4x4xf32>
    %20 = vector.broadcast %0 : f32 to vector<4x4xf32>
    %21 = arith.mulf %20, %15 : vector<4x4xf32>
    %22 = vector.broadcast %1 : f32 to vector<4x4xf32>
    %23 = arith.addf %21, %22 : vector<4x4xf32>
    %cst_9 = arith.constant dense<0.000000e+00> : vector<4x4xf32>
    %24 = tpu.matmul %23, %17, %cst_9 {dimension_numbers = #tpu.dot_dimension_numbers<[1], [0], [0], [1], [0, 0, 1, 1], [], []>} : vector<4x4xf32>, vector<4x4xf32>, vector<4x4xf32> -> vector<4x4xf32>
    %25 = vector.broadcast %6 : f32 to vector<4x4xf32>
    %26 = arith.mulf %25, %24 : vector<4x4xf32>
    %27 = vector.broadcast %8 : f32 to vector<4x4xf32>
    %28 = arith.addf %26, %27 : vector<4x4xf32>
    %cst_10 = arith.constant dense<0.000000e+00> : vector<4x4xf32>
    %29 = tpu.matmul %28, %19, %cst_10 {dimension_numbers = #tpu.dot_dimension_numbers<[1], [0], [0], [1], [0, 0, 1, 1], [], []>} : vector<4x4xf32>, vector<4x4xf32>, vector<4x4xf32> -> vector<4x4xf32>
    %30 = vector.broadcast %10 : f32 to vector<4x4xf32>
    %31 = arith.mulf %30, %28 : vector<4x4xf32>
    %32 = vector.broadcast %13 : f32 to vector<4x4xf32>
    %33 = arith.addf %31, %32 : vector<4x4xf32>
    %cst_11 = arith.constant 2.000000e+00 : f32
    %34 = vector.broadcast %cst_11 : f32 to vector<4x4xf32>
    %35 = arith.mulf %34, %29 : vector<4x4xf32>
    %36 = arith.addf %33, %35 : vector<4x4xf32>
    %c0_12 = arith.constant 0 : index
    %c0_13 = arith.constant 0 : index
    %37 = vector.load %arg2[%c0_12, %c0_13] : memref<4x4xf32, #tpu.memory_space<vmem>>, vector<4x4xf32>
    tpu.vector_store %arg2[%c0_12, %c0_13], %36 {strides = array<i32>} : memref<4x4xf32, #tpu.memory_space<vmem>>, vector<4x4xf32>,
    return
  }
}

</mosaic_0001>

<llo_original>
// kernel: tpu_custom_call.1
$region0: #{tpu_custom_call.1}
  #allocation0 [shape = 'u32[]', space=smem, size = 0x4, offset = 0x4, fixed_abs, tag = 'smem constant byte address 0x4 - core index']
  #allocation1 [shape = 'u32[72,128]{1,0:T(1,128)}', space=vmem, size = 0x9000, scoped, tag = 'internal scratch']
  %s0 = inlined_call_operand.hbm [shape: f32[8], index: 0, kind: input, shape index: {}]
  %s1 = inlined_call_operand.hbm [shape: f32[3,4,4], index: 1, kind: input, shape index: {}]
  %s2 = inlined_call_operand.hbm [shape: f32[4,4], index: 2, kind: output, shape index: {}]
  %s3 = sld [smem:[#allocation0]]
  $region26: #{tpu_custom_call.1} parent=0
    _
  %s5 = ssub.s32 1, %s3
  %s6 = scalar_select 0, %s5, %s3
  $region1: #{tpu_custom_call.1} parent=0
    #allocation2 [shape = 'u8[512]{0}', space=smem, size = 0x200, scoped, tag = 'input window, operand 0, single buffered']
    #allocation3 [shape = 's32[1]{0}', space=sflag, size = 0x4, scoped, tag = 'scoped memory for tpu_custom_call.1']
    #allocation4 [shape = 's32[1]{0}', space=sflag, size = 0x4, scoped, tag = 'scoped memory for tpu_custom_call.1']
    #allocation5 [shape = 's32[1]{0}', space=sflag, size = 0x4, scoped, tag = 'scoped memory for tpu_custom_call.1']
    #allocation6 [shape = 'u8[6144]{0}', space=vmem, size = 0x1800, scoped, tag = 'input window, operand 1, single buffered']
    #allocation7 [shape = 'u8[2048]{0}', space=vmem, size = 0x800, scoped, tag = 'output window, operand 0, single buffered']
    %7 = vsyncpa [#allocation5], 0
    %8 = vsyncpa [#allocation3], 0
    %9 = vsyncpa [#allocation4], 0
    // Predicated region
    $region2: #{tpu_custom_call.1} parent=1 // pred_check
      _
    $region3: #{tpu_custom_call.1} parent=1 // pred_check_branch
      %11 = sbr.rel (0) target = $region5
    $region4: #{tpu_custom_call.1} parent=1 // pred_region
      %13 = vsyncadd [#allocation5], 0
      %s15 = sshll.u32 %s0, 4
      %s16 = int_to_ptr.hbm [resolvable:$true] %s15
      %18 = dma.hbm_to_smem %s16, 16, [#allocation2], [#allocation5]
    $region5: #{tpu_custom_call.1} parent=1 // pred_fallthru
      _
    // Predicated region
    $region6: #{tpu_custom_call.1} parent=1 // pred_check
      _
    $region7: #{tpu_custom_call.1} parent=1 // pred_check_branch
      %20 = sbr.rel (0) target = $region9
    $region8: #{tpu_custom_call.1} parent=1 // pred_region
      %22 = vsyncadd [#allocation3], 0
      %s23 = sshll.u32 %s1, 4
      %s24 = int_to_ptr.hbm [resolvable:$true] %s23
      %s25 = sshll.u32 [#allocation6], 4
      %s26 = int_to_ptr.vmem [resolvable:$true] %s25
      %31 = dma.hbm_to_vmem [thread:$0]  %s24, 192, %s26, [#allocation3], 64, 64, 4
    $region9: #{tpu_custom_call.1} parent=1 // pred_fallthru
      _
    // Predicated region
    $region10: #{tpu_custom_call.1} parent=1 // pred_check
      _
    $region11: #{tpu_custom_call.1} parent=1 // pred_check_branch
      %33 = sbr.rel (0) target = $region13
    $region12: #{tpu_custom_call.1} parent=1 // pred_region
      %35 = dma.done [#allocation5], 16
    $region13: #{tpu_custom_call.1} parent=1 // pred_fallthru
      _
    // Predicated region
    $region14: #{tpu_custom_call.1} parent=1 // pred_check
      _
    $region15: #{tpu_custom_call.1} parent=1 // pred_check_branch
      %37 = sbr.rel (0) target = $region17
    $region16: #{tpu_custom_call.1} parent=1 // pred_region
      %39 = dma.done [#allocation3], 192
    $region17: #{tpu_custom_call.1} parent=1 // pred_fallthru
      _
    %40 = sfence
    %s41 = sld [smem:[#allocation2]]
    %s42 = sld [smem:[#allocation2 + $0x1]]
    %s43 = sld [smem:[#allocation2 + $0x4]]
    %s44 = sld [smem:[#allocation2 + $0x5]]
    %s45 = sld [smem:[#allocation2 + $0x6]]
    %s46 = sld [smem:[#allocation2 + $0x7]]
    %s47 = smul.f32 %s43, %s43
    %s48 = smul.f32 %s43, %s44
    %s49 = sadd.f32 %s48, %s44
    %s50 = smul.f32 %s45, %s43
    %s51 = smul.f32 %s50, 3.0
    %s52 = smul.f32 %s45, %s44
    %s53 = sadd.f32 %s52, %s46
    %s54 = smul.f32 %s53, 3.0
    %v55 = vld [vmem:[#allocation6] sm:$0xf]
    %s56 = scalar_lea.vmem [#allocation6], 4
    %v57 = vld [vmem:[%s56] sm:$0xf]
    %s58 = scalar_lea.vmem [#allocation6], 8
    %v59 = vld [vmem:[%s58] sm:$0xf]
    %v60 = vstv %s41
    %v61 = vmul.f32 %v60, %v55
    %v62 = vstv %s42
    %v63 = vadd.f32 %v61, %v62
    %vm64 = vcmask 31744
    %v66 = vsel %vm64, %v63, 0
    %vm68 = vcmask 1043456
    %v70 = vsel %vm68, %v57, 0
    %72 = vmatpush.msra.mxu0 0.0
    %73 = vmatpush.msra.mxu0 0.0
    %74 = vmatpush.msra.mxu0 0.0
    %75 = vmatpush.msra.mxu0 0.0
    %76 = vmatpush.msra.mxu0 0.0
    %77 = vmatpush.msra.mxu0 0.0
    %78 = vmatpush.msra.mxu0 0.0
    %79 = vmatpush.msra.mxu0 0.0
    %80 = vmatpush.msra.mxu0 0.0
    %81 = vmatpush.msra.mxu0 0.0
    %82 = vmatpush.msra.mxu0 0.0
    %83 = vmatpush.msra.mxu0 0.0
    %84 = vmatpush.msra.mxu0 0.0
    %85 = vmatpush.msra.mxu0 0.0
    %86 = vmatpush.msra.mxu0 0.0
    %87 = vmatpush.msra.mxu0 %v70
    %88 = vmatmul.f32.gmra.mxu0 %v66
    %v89 = vpop.f32.mrf.mxu0
    %v90 = vadd.f32 0.0, %v89
    %91 = vdwg.mxu0
    %v92 = vstv %s47
    %v93 = vmul.f32 %v92, %v90
    %v94 = vstv %s49
    %v95 = vadd.f32 %v93, %v94
    %v97 = vsel %vm64, %v95, 0
    %v100 = vsel %vm68, %v59, 0
    %102 = vmatpush.msra.mxu0 0.0
    %103 = vmatpush.msra.mxu0 0.0
    %104 = vmatpush.msra.mxu0 0.0
    %105 = vmatpush.msra.mxu0 0.0
    %106 = vmatpush.msra.mxu0 0.0
    %107 = vmatpush.msra.mxu0 0.0
    %108 = vmatpush.msra.mxu0 0.0
    %109 = vmatpush.msra.mxu0 0.0
    %110 = vmatpush.msra.mxu0 0.0
    %111 = vmatpush.msra.mxu0 0.0
    %112 = vmatpush.msra.mxu0 0.0
    %113 = vmatpush.msra.mxu0 0.0
    %114 = vmatpush.msra.mxu0 0.0
    %115 = vmatpush.msra.mxu0 0.0
    %116 = vmatpush.msra.mxu0 0.0
    %117 = vmatpush.msra.mxu0 %v100
    %118 = vmatmul.f32.gmra.mxu0 %v97
    %v119 = vpop.f32.mrf.mxu0
    %v120 = vadd.f32 0.0, %v119
    %121 = vdwg.mxu0
    %v122 = vstv %s51
    %v123 = vmul.f32 %v122, %v95
    %v124 = vstv %s54
    %v125 = vadd.f32 %v123, %v124
    %v126 = vmul.f32 %v120, 2.0
    %v127 = vadd.f32 %v125, %v126
    %vm128 = vcmask 27648
    %129 = vst.msk [vmem:[#allocation7] sm:$0xf] %vm128, %v127
    // Predicated region
    $region18: #{tpu_custom_call.1} parent=1 // pred_check
      _
    $region19: #{tpu_custom_call.1} parent=1 // pred_check_branch
      %131 = sbr.rel (0) target = $region21
    $region20: #{tpu_custom_call.1} parent=1 // pred_region
      %133 = vsyncadd [#allocation4], 0
      %s135 = sshll.u32 [#allocation7], 4
      %s136 = int_to_ptr.vmem [resolvable:$true] %s135
      %s137 = sshll.u32 %s2, 4
      %s138 = int_to_ptr.hbm [resolvable:$true] %s137
      %140 = dma.vmem_to_hbm [thread:$0]  %s136, 64, %s138, [#allocation4]
    $region21: #{tpu_custom_call.1} parent=1 // pred_fallthru
      _
    // Predicated region
    $region22: #{tpu_custom_call.1} parent=1 // pred_check
      _
    $region23: #{tpu_custom_call.1} parent=1 // pred_check_branch
      %142 = sbr.rel (0) target = $region25
    $region24: #{tpu_custom_call.1} parent=1 // pred_region
      %144 = dma.done [#allocation4], 64
    $region25: #{tpu_custom_call.1} parent=1 // pred_fallthru
      _
    %145 = vsyncpa [#allocation3], 1
    %146 = vsyncpa [#allocation4], 1
    %147 = vsyncpa [#allocation5], 1

</llo_original>
